<compile_context>
chip_gen: v7x
topology: tpu7x:2x2x1
jax: 0.10.0
libtpu: 0.0.40
codegen_flags: <defaults>
</compile_context>

<pallas_src>
import jax
import jax.numpy as jnp
from jax.experimental import pallas as pl
from jax.experimental.pallas import tpu as pltpu

GAMMA = 4.0      # implemented as integer squaring below: ((1-p)^2)^2
ALPHA = 1.0
EPSILON = 1e-9
# TODO(synk): list-valued `alpha` (per-class weights) is not implemented; the
# module default (scalar alpha=1) is what this kernel reproduces.


def _round_up(x, m):
    return ((x + m - 1) // m) * m


def _focal_loss_kernel(x_ref, t_ref, out_ref):
    # x_ref: (TB, C) logits, t_ref: (TB, 1) int32 targets,
    # out_ref: (1, 8, 128) f32 per-tile partial sum (broadcast; [0,0,0] read).
    x = x_ref[...].astype(jnp.float32)
    t = t_ref[...]                                       # (TB, 1) int32
    tb, c = x.shape

    col = jax.lax.broadcasted_iota(jnp.int32, (tb, c), 1)

    # Stable softmax pieces; only the target-class probability is needed, so
    # the exp for the denominator is the only full-tile transcendental.
    m = jnp.max(x, axis=-1, keepdims=True)               # (TB, 1)
    e = jnp.exp(x - m)                                    # (TB, C)
    denom = jnp.sum(e, axis=-1, keepdims=True)            # (TB, 1)

    # Gather the target-class logit per row (one-hot dot product).
    x_t = jnp.sum(jnp.where(col == t, x, 0.0), axis=-1, keepdims=True)  # (TB,1)

    p_t = jnp.exp(x_t - m) / denom                        # (TB, 1) target prob
    mask = (t != 0).astype(jnp.float32)                   # one_hot[:, 0] = 0

    q = 1.0 - p_t
    q2 = q * q
    focal = q2 * q2                                       # (1 - p)^4, gamma=4

    loss_row = -ALPHA * mask * focal * jnp.log(p_t + EPSILON)   # (TB, 1)
    partial = jnp.sum(loss_row)

    out_ref[...] = jnp.full(out_ref.shape, partial, dtype=jnp.float32)


def focal_loss(logits, target, *, tile_rows=512):
    """logits: (B, C) float (f32 or bf16); target: (B,) int. Scalar f32 loss."""
    b, c = logits.shape

    # Tile sizing: multiple of 8 sublanes, capped so double-buffered input
    # tiles stay comfortably inside scoped VMEM even for wide class dims
    # (v7x has only 64 MiB physical VMEM per TensorCore).
    bytes_per_row = _round_up(c, 128) * max(int(jnp.dtype(logits.dtype).itemsize), 2)
    rows_cap = max(8, (8 * 1024 * 1024) // bytes_per_row)
    tb = min(_round_up(b, 8), int(tile_rows), _round_up(rows_cap, 8))
    tb = max(8, (tb // 8) * 8)

    b_pad = _round_up(b, tb)
    if b_pad != b:
        logits = jnp.pad(logits, ((0, b_pad - b), (0, 0)))
        target = jnp.pad(target, (0, b_pad - b))          # class 0 -> masked out

    t2d = target.astype(jnp.int32).reshape(b_pad, 1)
    grid = b_pad // tb

    partials = pl.pallas_call(
        _focal_loss_kernel,
        out_shape=jax.ShapeDtypeStruct((grid, 8, 128), jnp.float32),
        grid_spec=pltpu.PrefetchScalarGridSpec(
            num_scalar_prefetch=0,
            grid=(grid,),
            in_specs=[
                pl.BlockSpec((tb, c), lambda i: (i, 0)),
                pl.BlockSpec((tb, 1), lambda i: (i, 0)),
            ],
            out_specs=pl.BlockSpec((1, 8, 128), lambda i: (i, 0, 0)),
        ),
        compiler_params=pltpu.CompilerParams(
            dimension_semantics=("parallel",),
            vmem_limit_bytes=48 * 1024 * 1024,
        ),
    )(logits, t2d)

    # Position [i, 0, 0] of each tile's block carries the partial sum; average
    # over the true (unpadded) batch size.
    return jnp.sum(partials[:, 0, 0]) / jnp.float32(b)


def _focal_loss_ref(logits, target):
    # pure-JAX reference mirroring the PyTorch module
    _, c = logits.shape
    one_hot = jax.nn.one_hot(target, c, dtype=jnp.float32)
    one_hot = one_hot.at[:, 0].set(0.0)
    p = jax.nn.softmax(logits.astype(jnp.float32), axis=-1)
    loss = -ALPHA * one_hot * jnp.power(1.0 - p, GAMMA) * jnp.log(p + EPSILON)
    return jnp.mean(jnp.sum(loss, axis=1))


if __name__ == "__main__":
    key = jax.random.PRNGKey(0)
    k_x, k_t = jax.random.split(key)

    # small shapes consistent with [batch_size, num_cls]
    B, C = 8, 16
    logits = jax.random.normal(k_x, (B, C), dtype=jnp.float32) * 2.0
    target = jax.random.randint(k_t, (B,), 0, C, dtype=jnp.int32)

    out = focal_loss(logits, target)
    out = jax.block_until_ready(out)
    ref = _focal_loss_ref(logits, target)
    assert jnp.allclose(out, ref, rtol=1e-4, atol=1e-6), (out, ref)

    # exercise the multi-tile + batch-padding path (tb=8, grid=3, 4 pad rows)
    B2 = 20
    logits2 = jax.random.normal(k_x, (B2, C), dtype=jnp.float32)
    target2 = jax.random.randint(k_t, (B2,), 0, C, dtype=jnp.int32)
    out2 = jax.block_until_ready(focal_loss(logits2, target2, tile_rows=8))
    ref2 = _focal_loss_ref(logits2, target2)
    assert jnp.allclose(out2, ref2, rtol=1e-4, atol=1e-6), (out2, ref2)

    print("KERNEL_OK")
</pallas_src>

<mosaic_0001>
module attributes {stable_mosaic.version = 11 : i64} {
  func.func @_focal_loss_kernel(%arg0: i32, %arg1: memref<8x16xf32, #tpu.memory_space<vmem>>, %arg2: memref<8x1xi32, #tpu.memory_space<vmem>>, %arg3: memref<1x8x128xf32, #tpu.memory_space<vmem>>) attributes {dimension_semantics = [#tpu.dimension_semantics<parallel>], iteration_bounds = array<i64: 1>, scalar_prefetch = 0 : i64, scratch_operands = 0 : i64, tpu.core_type = #tpu.core_type<tc>, window_params = [{transform_indices = @transform_0, window_bounds = array<i64: 8, 16>}, {transform_indices = @transform_1, window_bounds = array<i64: 8, 1>}, {transform_indices = @transform_2, window_bounds = array<i64: 1, 8, 128>}]} {
    %c0 = arith.constant 0 : index
    %c0_0 = arith.constant 0 : index
    %0 = vector.load %arg1[%c0, %c0_0] : memref<8x16xf32, #tpu.memory_space<vmem>>, vector<8x16xf32>
    %c0_1 = arith.constant 0 : index
    %c0_2 = arith.constant 0 : index
    %1 = vector.load %arg2[%c0_1, %c0_2] : memref<8x1xi32, #tpu.memory_space<vmem>>, vector<8x1xi32>
    %2 = tpu.iota {dimensions = array<i32: 1>} : vector<8x16xi32>
    %cst = arith.constant dense<0xFF800000> : vector<8xf32>
    %3 = vector.multi_reduction <maximumf>, %0, %cst [1] : vector<8x16xf32> to vector<8xf32>
    %4 = vector.shape_cast %3 : vector<8xf32> to vector<8x1xf32>
    %5 = vector.broadcast %4 : vector<8x1xf32> to vector<8x16xf32>
    %6 = arith.subf %0, %5 : vector<8x16xf32>
    %7 = math.exp %6 : vector<8x16xf32>
    %cst_3 = arith.constant dense<0.000000e+00> : vector<8xf32>
    %8 = vector.multi_reduction <add>, %7, %cst_3 [1] : vector<8x16xf32> to vector<8xf32>
    %9 = vector.shape_cast %8 : vector<8xf32> to vector<8x1xf32>
    %10 = vector.broadcast %1 : vector<8x1xi32> to vector<8x16xi32>
    %11 = arith.cmpi eq, %2, %10 : vector<8x16xi32>
    %cst_4 = arith.constant 0.000000e+00 : f32
    %12 = vector.broadcast %cst_4 : f32 to vector<8x16xf32>
    %13 = arith.select %11, %0, %12 : vector<8x16xi1>, vector<8x16xf32>
    %cst_5 = arith.constant dense<0.000000e+00> : vector<8xf32>
    %14 = vector.multi_reduction <add>, %13, %cst_5 [1] : vector<8x16xf32> to vector<8xf32>
    %15 = vector.shape_cast %14 : vector<8xf32> to vector<8x1xf32>
    %16 = arith.subf %15, %4 : vector<8x1xf32>
    %17 = math.exp %16 : vector<8x1xf32>
    %18 = arith.divf %17, %9 : vector<8x1xf32>
    %c0_i32 = arith.constant 0 : i32
    %19 = vector.broadcast %c0_i32 : i32 to vector<8x1xi32>
    %20 = arith.cmpi ne, %1, %19 : vector<8x1xi32>
    %21 = arith.extui %20 : vector<8x1xi1> to vector<8x1xi32>
    %22 = arith.sitofp %21 : vector<8x1xi32> to vector<8x1xf32>
    %cst_6 = arith.constant 1.000000e+00 : f32
    %23 = vector.broadcast %cst_6 : f32 to vector<8x1xf32>
    %24 = arith.subf %23, %18 : vector<8x1xf32>
    %25 = arith.mulf %24, %24 : vector<8x1xf32>
    %26 = arith.mulf %25, %25 : vector<8x1xf32>
    %cst_7 = arith.constant -1.000000e+00 : f32
    %27 = vector.broadcast %cst_7 : f32 to vector<8x1xf32>
    %28 = arith.mulf %27, %22 : vector<8x1xf32>
    %29 = arith.mulf %28, %26 : vector<8x1xf32>
    %cst_8 = arith.constant 9.99999971E-10 : f32
    %30 = vector.broadcast %cst_8 : f32 to vector<8x1xf32>
    %31 = arith.addf %18, %30 : vector<8x1xf32>
    %32 = math.log %31 : vector<8x1xf32>
    %33 = arith.mulf %29, %32 : vector<8x1xf32>
    %34 = vector.shape_cast %33 : vector<8x1xf32> to vector<1x8x1xf32>
    %cst_9 = arith.constant dense<0.000000e+00> : vector<1xf32>
    %35 = vector.multi_reduction <add>, %34, %cst_9 [1, 2] : vector<1x8x1xf32> to vector<1xf32>
    %36 = vector.shape_cast %35 : vector<1xf32> to vector<1x1x1xf32>
    %37 = vector.extract %36[0, 0, 0] : f32 from vector<1x1x1xf32>
    %38 = vector.broadcast %37 : f32 to vector<1x8x128xf32>
    %c0_10 = arith.constant 0 : index
    %c0_11 = arith.constant 0 : index
    %c0_12 = arith.constant 0 : index
    %39 = vector.load %arg3[%c0_10, %c0_11, %c0_12] : memref<1x8x128xf32, #tpu.memory_space<vmem>>, vector<1x8x128xf32>
    tpu.vector_store %arg3[%c0_10, %c0_11, %c0_12], %38 {strides = array<i32>} : memref<1x8x128xf32, #tpu.memory_space<vmem>>, vector<1x8x128xf32>,
    return
  }
  func.func @transform_0(%arg0: i32) -> (i32, i32) {
    %c0_i32 = arith.constant 0 : i32
    %c0_i32_0 = arith.constant 0 : i32
    return %arg0, %c0_i32 : i32, i32
  }
  func.func @transform_1(%arg0: i32) -> (i32, i32) {
    %c0_i32 = arith.constant 0 : i32
    %c0_i32_0 = arith.constant 0 : i32
    return %arg0, %c0_i32 : i32, i32
  }
  func.func @transform_2(%arg0: i32) -> (i32, i32, i32) {
    %c0_i32 = arith.constant 0 : i32
    %c0_i32_0 = arith.constant 0 : i32
    %c0_i32_1 = arith.constant 0 : i32
    return %arg0, %c0_i32, %c0_i32_0 : i32, i32, i32
  }
}

</mosaic_0001>

<llo_original>
// kernel: tpu_custom_call.1
$region0: #{tpu_custom_call.1}
  #allocation0 [shape = 'u32[]', space=smem, size = 0x4, offset = 0x4, fixed_abs, tag = 'smem constant byte address 0x4 - core index']
  #allocation1 [shape = 'u32[144,128]{1,0:T(1,128)}', space=vmem, size = 0x12000, scoped, tag = 'internal scratch']
  %s0 = inlined_call_operand.vmem [shape: f32[8,16], index: 0, kind: input, shape index: {}]
  %s1 = inlined_call_operand.vmem [shape: s32[8,1], index: 1, kind: input, shape index: {}]
  %s2 = inlined_call_operand.hbm [shape: f32[1,8,128], index: 2, kind: output, shape index: {}]
  %s3 = sld [smem:[#allocation0]]
  $region18: #{tpu_custom_call.1} parent=0
    _
  %s5 = ssub.s32 1, %s3
  %s6 = scalar_select 0, %s5, %s3
  $region1: #{tpu_custom_call.1} parent=0
    #allocation2 [shape = 'u8[4096]{0}', space=vmem, size = 0x1000, scoped, tag = 'output window, operand 0, single buffered']
    #allocation3 [shape = 's32[1]{0}', space=sflag, size = 0x4, scoped, tag = 'scoped memory for tpu_custom_call.1']
    %7 = vsyncpa [#allocation3], 0
    // Predicated region
    $region2: #{tpu_custom_call.1} parent=1 // pred_check
      _
    $region3: #{tpu_custom_call.1} parent=1 // pred_check_branch
      %9 = sbr.rel (0) target = $region5
    $region4: #{tpu_custom_call.1} parent=1 // pred_region
      _
    $region5: #{tpu_custom_call.1} parent=1 // pred_fallthru
      _
    // Predicated region
    $region6: #{tpu_custom_call.1} parent=1 // pred_check
      _
    $region7: #{tpu_custom_call.1} parent=1 // pred_check_branch
      %11 = sbr.rel (0) target = $region9
    $region8: #{tpu_custom_call.1} parent=1 // pred_region
      _
    $region9: #{tpu_custom_call.1} parent=1 // pred_fallthru
      _
    %v12 = vld [vmem:[%s0] sm:$0xff]
    %v13 = vld [vmem:[%s1] sm:$0xff]
    %v14 = vlaneseq
    %v15 = vand.u32 %v14, 127
    %vm16 = vcmask 130048
    %v17 = vsel %vm16, %v12, -inf
    %18 = vmax.xlane.f32.xlu0 %v17
    %v19 = vpop.xlane.xlu0 %18
    %v20 = vsub.f32 %v12, %v19
    %v21 = vmul.f32 %v20, 1.442695
    %v22 = vpow.pop %v21
    %v23 = vsel %vm16, %v22, 0.0
    %24 = vadd.xlane.f32.xlu0 %v23
    %v25 = vpop.xlane.xlu0 %24
    %26 = vset.pattern.permute.xlu0 0
    %27 = vperm.xlu0 %26, %v13
    %v28 = vpop.permute.xlu0 %27
    %vm29 = vcmp.eq.s32.totalorder %v15, %v28
    %v30 = vsel %vm29, %v12, 0.0
    %v31 = vsel %vm16, %v30, 0.0
    %32 = vadd.xlane.f32.xlu0 %v31
    %v33 = vpop.xlane.xlu0 %32
    %v34 = vsub.f32 %v33, %v19
    %v35 = vmul.f32 %v34, 1.442695
    %v36 = vpow.pop %v35
    %v37 = vrcp.pop %v25
    %v38 = vmul.f32 %v36, %v37
    %vm39 = vcmp.ne.s32.totalorder %v13, 0
    %v40 = vsel %vm39, 1, 0
    %v41 = vcvt.s32.f32 %v40
    %v42 = vsub.f32 1.0, %v38
    %v43 = vmul.f32 %v42, %v42
    %v44 = vmul.f32 %v43, %v43
    %v45 = vmul.f32 %v41, -1.0
    %v46 = vmul.f32 %v45, %v44
    %v47 = vadd.f32 %v38, 1e-09
    %v48 = vlog2.pop %v47
    %v49 = vmul.f32 %v48, 0.6931472
    %v50 = vmul.f32 %v46, %v49
    %vm51 = vcmask 7168
    %v52 = vsel %vm51, %v50, 0.0
    %53 = vadd.xlane.f32.xlu0 %v52
    %v54 = vpop.xlane.xlu0 %53
    %v55 = vrot.slane %v54, 4
    %v56 = vadd.f32 %v54, %v55
    %v57 = vrot.slane %v56, 2
    %v58 = vadd.f32 %v56, %v57
    %v59 = vrot.slane %v58, 1
    %v60 = vadd.f32 %v58, %v59
    %s61 = vtos %v60
    %v62 = vstv %s61
    %63 = vst [vmem:[#allocation2] sm:$0xff] %v62
    // Predicated region
    $region10: #{tpu_custom_call.1} parent=1 // pred_check
      _
    $region11: #{tpu_custom_call.1} parent=1 // pred_check_branch
      %65 = sbr.rel (0) target = $region13
    $region12: #{tpu_custom_call.1} parent=1 // pred_region
      %s67 = ssub.s32 128, 128
      %68 = vsyncadd [#allocation3], %s67
      %s70 = sshll.u32 [#allocation2], 4
      %s71 = int_to_ptr.vmem [resolvable:$true] %s70
      %73 = dma.vmem_to_hbm [thread:$0]  %s71, 128, %s2, [#allocation3]
    $region13: #{tpu_custom_call.1} parent=1 // pred_fallthru
      _
    // Predicated region
    $region14: #{tpu_custom_call.1} parent=1 // pred_check
      _
    $region15: #{tpu_custom_call.1} parent=1 // pred_check_branch
      %75 = sbr.rel (0) target = $region17
    $region16: #{tpu_custom_call.1} parent=1 // pred_region
      %76 = dma.done [#allocation3], 128
    $region17: #{tpu_custom_call.1} parent=1 // pred_fallthru
      _
    %77 = vsyncpa [#allocation3], 1

</llo_original>
